<compile_context>
chip_gen: v7x
topology: tpu7x:2x2x1
jax: 0.10.0
libtpu: 0.0.40
codegen_flags: <defaults>
</compile_context>

<pallas_src>
import jax
import jax.numpy as jnp
from jax.experimental import pallas as pl
from jax.experimental.pallas import tpu as pltpu


def _attention_kernel(emb_ref, wt_ref, b_ref, v_ref, out_ref):
    bt, s, h = emb_ref.shape
    emb_f32 = emb_ref[...]                                  # (Bt, S, H) native f32
    emb_bf16 = emb_f32.astype(jnp.bfloat16)                 # single in-kernel cast

    # ---- transformed = tanh(emb @ W^T + b): one collapsed MXU matmul -----
    lin = jnp.dot(emb_bf16.reshape(bt * s, h), wt_ref[...],
                  preferred_element_type=jnp.float32)       # (Bt*S, H) f32
    transformed = jnp.tanh(lin + b_ref[...]).reshape(bt, s, h)   # f32

    # ---- scores = <transformed, v> : lane-dense (Bt, S), f32 on VPU/XLU --
    scores = jnp.sum(transformed * v_ref[...][None], axis=-1)    # (Bt, S)

    # ---- softmax over the sequence axis (last axis, exact) ---------------
    m = jnp.max(scores, axis=-1, keepdims=True)             # (Bt, 1)
    e = jnp.exp(scores - m)                                 # (Bt, S)
    denom = jnp.sum(e, axis=-1, keepdims=True)              # (Bt, 1)

    # ---- attended = (e @ emb) / denom : MXU contraction over S -----------
    acc = jnp.einsum("bqs,bsh->bqh", e[:, None, :].astype(jnp.bfloat16),
                     emb_bf16, preferred_element_type=jnp.float32)  # (Bt,1,H)
    attended = acc[:, 0, :] * pl.reciprocal(denom, approx=True)     # (Bt, H)

    out_ref[...] = attended.astype(out_ref.dtype)           # dense (Bt, H) store


def attention_layer_forward(embeddings, w_weight, w_bias, v_weight,
                            *, block_b=None):
    """embeddings: (B, S, H); w_weight: (H, H) torch-style (out, in);
    w_bias: (H,); v_weight: (1, H). Returns (B, H) float32."""
    B, S, H = embeddings.shape

    emb = jnp.asarray(embeddings)                                    # native dtype, streamed
    wt = jnp.asarray(w_weight, jnp.float32).T.astype(jnp.bfloat16)   # (H_in, H_out) resident
    b = jnp.asarray(w_bias, jnp.float32).reshape(1, H)               # (1, H) f32
    v = jnp.asarray(v_weight, jnp.float32).reshape(1, H)             # (1, H) f32, lane-dense

    if block_b is None:
        # Full per-step working set per batch row:
        #   2 x f32 emb double buffers (8B) + bf16 cast (2B) + f32 lin (4B)
        #   + f32 transformed (4B)  ~= 18 bytes per S*H element.
        # 8 MiB budget keeps us inside v5e's 16 MiB scoped-VMEM default.
        budget = 8 << 20
        row_bytes = S * H * 18
        block_b = max(1, budget // max(row_bytes, 1))
        if block_b >= B:
            block_b = B
        else:
            block_b = (block_b // 8) * 8        # sublane-dense output block
            if block_b == 0:
                block_b = min(8, B)
    grid_b = pl.cdiv(B, block_b)

    out = pl.pallas_call(
        _attention_kernel,
        out_shape=jax.ShapeDtypeStruct((B, H), jnp.float32),
        grid=(grid_b,),
        in_specs=[
            pl.BlockSpec((block_b, S, H), lambda i: (i, 0, 0)),   # streamed emb tiles
            pl.BlockSpec((H, H), lambda i: (0, 0)),               # resident W^T (bf16)
            pl.BlockSpec((1, H), lambda i: (0, 0)),               # resident bias (f32)
            pl.BlockSpec((1, H), lambda i: (0, 0)),               # resident v row (f32)
        ],
        out_specs=pl.BlockSpec((block_b, H), lambda i: (i, 0)),   # dense 2-D output slab
        compiler_params=pltpu.CompilerParams(
            dimension_semantics=("parallel",)),   # v7x megacore over batch
    )(emb, wt, b, v)
    return out


def _reference(embeddings, w_weight, w_bias, v_weight):
    # Pure-JAX f32 reference matching the PyTorch module exactly.
    transformed = jnp.tanh(
        jnp.einsum("bsh,oh->bso", embeddings, w_weight) + w_bias)
    scores = jnp.einsum("bsh,oh->bso", transformed, v_weight)    # (B, S, 1)
    attn = jax.nn.softmax(scores, axis=1)                        # (B, S, 1)
    return jnp.sum(attn * embeddings, axis=1)                    # (B, H)


if __name__ == "__main__":
    B, S, H = 2, 8, 32
    key = jax.random.PRNGKey(0)
    k_emb, k_w, k_wb, k_v = jax.random.split(key, 4)

    # Deterministic parameter init (torch.nn.Linear-style uniform bounds).
    bound = 1.0 / (H ** 0.5)
    embeddings = jax.random.normal(k_emb, (B, S, H), dtype=jnp.float32)
    w_weight = jax.random.uniform(k_w, (H, H), jnp.float32, -bound, bound)  # (out, in)
    w_bias = jax.random.uniform(k_wb, (H,), jnp.float32, -bound, bound)
    v_weight = jax.random.uniform(k_v, (1, H), jnp.float32, -bound, bound)  # (out=1, in)

    out = attention_layer_forward(embeddings, w_weight, w_bias, v_weight)
    out = jax.block_until_ready(out)

    ref = _reference(embeddings, w_weight, w_bias, v_weight)
    assert out.shape == (B, H)
    # bf16 MXU operands (W matmul, weighted sum) -> tolerance loosened vs f32 ref.
    assert jnp.allclose(out, ref, atol=3e-2, rtol=3e-2), "mismatch vs reference"

    print("KERNEL_OK")
</pallas_src>

<mosaic_0001>
module attributes {stable_mosaic.version = 11 : i64} {
  func.func @_attention_kernel(%arg0: i32, %arg1: memref<2x8x32xf32, #tpu.memory_space<vmem>>, %arg2: memref<32x32xbf16, #tpu.memory_space<vmem>>, %arg3: memref<1x32xf32, #tpu.memory_space<vmem>>, %arg4: memref<1x32xf32, #tpu.memory_space<vmem>>, %arg5: memref<2x32xf32, #tpu.memory_space<vmem>>) attributes {dimension_semantics = [#tpu.dimension_semantics<parallel>], iteration_bounds = array<i64: 1>, scalar_prefetch = 0 : i64, scratch_operands = 0 : i64, tpu.core_type = #tpu.core_type<tc>, window_params = [{transform_indices = @transform_0, window_bounds = array<i64: 2, 8, 32>}, {pipeline_mode = #tpu.pipeline_mode<synchronous>, transform_indices = @transform_1, window_bounds = array<i64: 32, 32>}, {pipeline_mode = #tpu.pipeline_mode<synchronous>, transform_indices = @transform_2, window_bounds = array<i64: 1, 32>}, {pipeline_mode = #tpu.pipeline_mode<synchronous>, transform_indices = @transform_3, window_bounds = array<i64: 1, 32>}, {transform_indices = @transform_4, window_bounds = array<i64: 2, 32>}]} {
    %c0 = arith.constant 0 : index
    %c0_0 = arith.constant 0 : index
    %c0_1 = arith.constant 0 : index
    %0 = vector.load %arg1[%c0, %c0_0, %c0_1] : memref<2x8x32xf32, #tpu.memory_space<vmem>>, vector<2x8x32xf32>
    %1 = arith.truncf %0 : vector<2x8x32xf32> to vector<2x8x32xbf16>
    %2 = vector.shape_cast %1 : vector<2x8x32xbf16> to vector<16x32xbf16>
    %c0_2 = arith.constant 0 : index
    %c0_3 = arith.constant 0 : index
    %3 = vector.load %arg2[%c0_2, %c0_3] : memref<32x32xbf16, #tpu.memory_space<vmem>>, vector<32x32xbf16>
    %cst = arith.constant dense<0.000000e+00> : vector<16x32xf32>
    %4 = tpu.matmul %2, %3, %cst {dimension_numbers = #tpu.dot_dimension_numbers<[1], [0], [0], [1], [0, 0, 1, 1], [], []>} : vector<16x32xbf16>, vector<32x32xbf16>, vector<16x32xf32> -> vector<16x32xf32>
    %c0_4 = arith.constant 0 : index
    %c0_5 = arith.constant 0 : index
    %5 = vector.load %arg3[%c0_4, %c0_5] : memref<1x32xf32, #tpu.memory_space<vmem>>, vector<1x32xf32>
    %6 = vector.broadcast %5 : vector<1x32xf32> to vector<16x32xf32>
    %7 = arith.addf %4, %6 : vector<16x32xf32>
    %8 = math.tanh %7 : vector<16x32xf32>
    %9 = vector.shape_cast %8 : vector<16x32xf32> to vector<2x8x32xf32>
    %c0_6 = arith.constant 0 : index
    %c0_7 = arith.constant 0 : index
    %10 = vector.load %arg4[%c0_6, %c0_7] : memref<1x32xf32, #tpu.memory_space<vmem>>, vector<1x32xf32>
    %11 = vector.shape_cast %10 : vector<1x32xf32> to vector<1x1x32xf32>
    %12 = vector.broadcast %11 : vector<1x1x32xf32> to vector<2x8x32xf32>
    %13 = arith.mulf %9, %12 : vector<2x8x32xf32>
    %cst_8 = arith.constant dense<0.000000e+00> : vector<2x8xf32>
    %14 = vector.multi_reduction <add>, %13, %cst_8 [2] : vector<2x8x32xf32> to vector<2x8xf32>
    %cst_9 = arith.constant dense<0xFF800000> : vector<2xf32>
    %15 = vector.multi_reduction <maximumf>, %14, %cst_9 [1] : vector<2x8xf32> to vector<2xf32>
    %16 = vector.shape_cast %15 : vector<2xf32> to vector<2x1xf32>
    %17 = vector.broadcast %16 : vector<2x1xf32> to vector<2x8xf32>
    %18 = arith.subf %14, %17 : vector<2x8xf32>
    %19 = math.exp %18 : vector<2x8xf32>
    %cst_10 = arith.constant dense<0.000000e+00> : vector<2xf32>
    %20 = vector.multi_reduction <add>, %19, %cst_10 [1] : vector<2x8xf32> to vector<2xf32>
    %21 = vector.shape_cast %20 : vector<2xf32> to vector<2x1xf32>
    %22 = vector.shape_cast %19 : vector<2x8xf32> to vector<2x1x8xf32>
    %23 = arith.truncf %22 : vector<2x1x8xf32> to vector<2x1x8xbf16>
    "tpu.trace_start"() <{level = 10 : i32, message = "bqs,bsh->bqh"}> : () -> ()
    %cst_11 = arith.constant dense<0.000000e+00> : vector<2x1x32xf32>
    %24 = tpu.matmul %23, %1, %cst_11 {dimension_numbers = #tpu.dot_dimension_numbers<[2], [1], [1], [2], [0, 0, 0, 1, 1, 2], [0], [0]>} : vector<2x1x8xbf16>, vector<2x8x32xbf16>, vector<2x1x32xf32> -> vector<2x1x32xf32>
    "tpu.trace_stop"() : () -> ()
    %25 = vector.shape_cast %24 : vector<2x1x32xf32> to vector<2x32xf32>
    %26 = tpu.reciprocal %21 {approx = true} : vector<2x1xf32> -> vector<2x1xf32>
    %27 = vector.broadcast %26 : vector<2x1xf32> to vector<2x32xf32>
    %28 = arith.mulf %25, %27 : vector<2x32xf32>
    %c0_12 = arith.constant 0 : index
    %c0_13 = arith.constant 0 : index
    %29 = vector.load %arg5[%c0_12, %c0_13] : memref<2x32xf32, #tpu.memory_space<vmem>>, vector<2x32xf32>
    tpu.vector_store %arg5[%c0_12, %c0_13], %28 {strides = array<i32>} : memref<2x32xf32, #tpu.memory_space<vmem>>, vector<2x32xf32>,
    return
  }
  func.func @transform_0(%arg0: i32) -> (i32, i32, i32) {
    %c0_i32 = arith.constant 0 : i32
    %c0_i32_0 = arith.constant 0 : i32
    %c0_i32_1 = arith.constant 0 : i32
    return %arg0, %c0_i32, %c0_i32_0 : i32, i32, i32
  }
  func.func @transform_1(%arg0: i32) -> (i32, i32) {
    %c0_i32 = arith.constant 0 : i32
    %c0_i32_0 = arith.constant 0 : i32
    %c0_i32_1 = arith.constant 0 : i32
    return %c0_i32, %c0_i32_0 : i32, i32
  }
  func.func @transform_2(%arg0: i32) -> (i32, i32) {
    %c0_i32 = arith.constant 0 : i32
    %c0_i32_0 = arith.constant 0 : i32
    %c0_i32_1 = arith.constant 0 : i32
    return %c0_i32, %c0_i32_0 : i32, i32
  }
  func.func @transform_3(%arg0: i32) -> (i32, i32) {
    %c0_i32 = arith.constant 0 : i32
    %c0_i32_0 = arith.constant 0 : i32
    %c0_i32_1 = arith.constant 0 : i32
    return %c0_i32, %c0_i32_0 : i32, i32
  }
  func.func @transform_4(%arg0: i32) -> (i32, i32) {
    %c0_i32 = arith.constant 0 : i32
    %c0_i32_0 = arith.constant 0 : i32
    return %arg0, %c0_i32 : i32, i32
  }
}

</mosaic_0001>

<llo_original>
// kernel: tpu_custom_call.1
$region0: #{tpu_custom_call.1}
  #allocation0 [shape = 'u32[]', space=smem, size = 0x4, offset = 0x4, fixed_abs, tag = 'smem constant byte address 0x4 - core index']
  #allocation1 [shape = 'u32[144,128]{1,0:T(1,128)}', space=vmem, size = 0x12000, scoped, tag = 'internal scratch']
  %s0 = inlined_call_operand.hbm [shape: f32[2,8,32], index: 0, kind: input, shape index: {}]
  %s1 = inlined_call_operand.hbm [shape: bf16[32,32], index: 1, kind: input, shape index: {}]
  %s2 = inlined_call_operand.vmem [shape: f32[1,32], index: 2, kind: input, shape index: {}]
  %s3 = inlined_call_operand.vmem [shape: f32[1,32], index: 3, kind: input, shape index: {}]
  %s4 = inlined_call_operand.hbm [shape: f32[2,32], index: 4, kind: output, shape index: {}]
  %s5 = sld [smem:[#allocation0]]
  $region34: #{tpu_custom_call.1} parent=0
    _
  %s7 = ssub.s32 1, %s5
  %s8 = scalar_select 0, %s7, %s5
  $region1: #{tpu_custom_call.1} parent=0
    #allocation2 [shape = 'u8[8192]{0}', space=vmem, size = 0x2000, scoped, tag = 'input window, operand 0, single buffered']
    #allocation3 [shape = 's32[1]{0}', space=sflag, size = 0x4, scoped, tag = 'scoped memory for tpu_custom_call.1']
    #allocation4 [shape = 's32[1]{0}', space=sflag, size = 0x4, scoped, tag = 'scoped memory for tpu_custom_call.1']
    #allocation5 [shape = 'u8[8192]{0}', space=vmem, size = 0x2000, scoped, tag = 'input window, operand 1, single buffered']
    #allocation6 [shape = 's32[1]{0}', space=sflag, size = 0x4, scoped, tag = 'scoped memory for tpu_custom_call.1']
    #allocation7 [shape = 'u8[1024]{0}', space=vmem, size = 0x400, scoped, tag = 'output window, operand 0, single buffered']
    %9 = vsyncpa [#allocation3], 0
    %10 = vsyncpa [#allocation6], 0
    %11 = vsyncpa [#allocation4], 0
    // Predicated region
    $region2: #{tpu_custom_call.1} parent=1 // pred_check
      _
    $region3: #{tpu_custom_call.1} parent=1 // pred_check_branch
      %13 = sbr.rel (0) target = $region5
    $region4: #{tpu_custom_call.1} parent=1 // pred_region
      %s15 = ssub.s32 256, 256
      %16 = vsyncadd [#allocation3], %s15
      %s17 = sshll.u32 [#allocation2], 4
      %s18 = int_to_ptr.vmem [resolvable:$true] %s17
      %23 = dma.hbm_to_vmem [thread:$0]  %s0, 256, %s18, [#allocation3], 128, 128, 8
    $region5: #{tpu_custom_call.1} parent=1 // pred_fallthru
      _
    // Predicated region
    $region6: #{tpu_custom_call.1} parent=1 // pred_check
      _
    $region7: #{tpu_custom_call.1} parent=1 // pred_check_branch
      %25 = sbr.rel (0) target = $region9
    $region8: #{tpu_custom_call.1} parent=1 // pred_region
      %s27 = ssub.s32 256, 256
      %28 = vsyncadd [#allocation6], %s27
      %s29 = sshll.u32 [#allocation5], 4
      %s30 = int_to_ptr.vmem [resolvable:$true] %s29
      %35 = dma.hbm_to_vmem [thread:$0]  %s1, 256, %s30, [#allocation6], 64, 64, 4
    $region9: #{tpu_custom_call.1} parent=1 // pred_fallthru
      _
    // Predicated region
    $region10: #{tpu_custom_call.1} parent=1 // pred_check
      _
    $region11: #{tpu_custom_call.1} parent=1 // pred_check_branch
      %37 = sbr.rel (0) target = $region13
    $region12: #{tpu_custom_call.1} parent=1 // pred_region
      _
    $region13: #{tpu_custom_call.1} parent=1 // pred_fallthru
      _
    // Predicated region
    $region14: #{tpu_custom_call.1} parent=1 // pred_check
      _
    $region15: #{tpu_custom_call.1} parent=1 // pred_check_branch
      %39 = sbr.rel (0) target = $region17
    $region16: #{tpu_custom_call.1} parent=1 // pred_region
      _
    $region17: #{tpu_custom_call.1} parent=1 // pred_fallthru
      _
    // Predicated region
    $region18: #{tpu_custom_call.1} parent=1 // pred_check
      _
    $region19: #{tpu_custom_call.1} parent=1 // pred_check_branch
      %41 = sbr.rel (0) target = $region21
    $region20: #{tpu_custom_call.1} parent=1 // pred_region
      %42 = dma.done [#allocation3], 256
    $region21: #{tpu_custom_call.1} parent=1 // pred_fallthru
      _
    // Predicated region
    $region22: #{tpu_custom_call.1} parent=1 // pred_check
      _
    $region23: #{tpu_custom_call.1} parent=1 // pred_check_branch
      %44 = sbr.rel (0) target = $region25
    $region24: #{tpu_custom_call.1} parent=1 // pred_region
      %45 = dma.done [#allocation6], 256
    $region25: #{tpu_custom_call.1} parent=1 // pred_fallthru
      _
    %v47 = vld [vmem:[#allocation2] sm:$0xff]
    %v48 = vld [vmem:[#allocation2 + $0x8] sm:$0xff]
    %v49 = vpack.c.bf16 %v47, %v47
    %v50 = vpack.c.bf16 %v48, %v48
    %v51 = vld [vmem:[#allocation5] sm:$0xf]
    %v52 = vld [vmem:[#allocation5 + $0x4] sm:$0xf]
    %v53 = vld [vmem:[#allocation5 + $0x8] sm:$0xf]
    %v54 = vld [vmem:[#allocation5 + $0xc] sm:$0xf]
    %v55 = vld [vmem:[%s2] sm:$0x1]
    %v57 = vlaneseq
    %v58 = vshrl.u32 %v57, 7
    %v59 = vsub.s32 0, %v58
    %v60 = vrot.slane %v55, %v59
    %v64 = vunpack.c.l.b16 %v49
    %v65 = vunpack.c.l.b16 %v50
    %v66 = vpack.c.b16 %v65, %v64
    %v71 = vunpack.c.l.b16 %v51
    %v72 = vunpack.c.l.b16 %v52
    %v73 = vunpack.c.l.b16 %v53
    %v74 = vunpack.c.l.b16 %v54
    %v75 = vpack.c.b16 %v72, %v71
    %v76 = vpack.c.b16 %v74, %v73
    %vm79 = vcmask 261120
    %v81 = vsel %vm79, %v66, 0
    %83 = vmatprep.subr.bf16.mxu0 0
    %84 = vmatpush1.bf16.msra.mxu0 %v75
    %85 = vmatprep.subr.bf16.mxu0 0
    %86 = vmatpush1.bf16.msra.mxu0 %v76
    %87 = vmatprep.subr.bf16.mxu0 0
    %88 = vmatpush1.bf16.msra.mxu0 0
    %89 = vmatprep.subr.bf16.mxu0 0
    %90 = vmatpush1.bf16.msra.mxu0 0
    %91 = vmatprep.subr.bf16.mxu0 0
    %92 = vmatpush1.bf16.msra.mxu0 0
    %93 = vmatprep.subr.bf16.mxu0 0
    %94 = vmatpush1.bf16.msra.mxu0 0
    %95 = vmatprep.subr.bf16.mxu0 0
    %96 = vmatpush1.bf16.msra.mxu0 0
    %97 = vmatprep.subr.bf16.mxu0 0
    %98 = vmatpush1.bf16.msra.mxu0 0
    %99 = vmatprep.subr.bf16.mxu0 0
    %100 = vmatpush1.bf16.msra.mxu0 0
    %101 = vmatprep.subr.bf16.mxu0 0
    %102 = vmatpush1.bf16.msra.mxu0 0
    %103 = vmatprep.subr.bf16.mxu0 0
    %104 = vmatpush1.bf16.msra.mxu0 0
    %105 = vmatprep.subr.bf16.mxu0 0
    %106 = vmatpush1.bf16.msra.mxu0 0
    %107 = vmatprep.subr.bf16.mxu0 0
    %108 = vmatpush1.bf16.msra.mxu0 0
    %109 = vmatprep.subr.bf16.mxu0 0
    %110 = vmatpush1.bf16.msra.mxu0 0
    %111 = vmatprep.subr.bf16.mxu0 0
    %112 = vmatpush1.bf16.msra.mxu0 0
    %113 = vmatprep.subr.bf16.mxu0 0
    %114 = vmatpush1.bf16.msra.mxu0 0
    %115 = vmatprep.mubr.bf16.mxu0 0
    %116 = vmatmul.mubr.bf16.gmra.mrb[0].mxu0 %v81
    %v117 = vpop.f32.mrb[0].mxu0
    %v118 = vadd.f32 %v60, %v117
    %v119 = vpop.f32.mrb[0].mxu0
    %v120 = vpop.f32.mrb[0].mxu0
    %v121 = vadd.f32 %v60, %v120
    %v122 = vpop.f32.mrb[0].mxu0
    %123 = vdwg.mxu0
    %v124 = vtanh.pop %v118
    %v125 = vtanh.pop %v121
    %v126 = vld [vmem:[%s3] sm:$0x1]
    %v128 = vlaneseq
    %v129 = vshrl.u32 %v128, 7
    %v130 = vsub.s32 0, %v129
    %v131 = vrot.slane %v126, %v130
    %v133 = vmul.f32 %v124, %v131
    %v134 = vmul.f32 %v125, %v131
    %v135 = vsel %vm79, %v133, 0.0
    %136 = vadd.xlane.f32.xlu0 %v135
    %v137 = vpop.xlane.xlu0 %136
    %v138 = vsel %vm79, %v134, 0.0
    %139 = vadd.xlane.f32.xlu0 %v138
    %v140 = vpop.xlane.xlu0 %139
    %v143 = vlaneseq
    %v144 = vand.u32 %v143, 127
    %v145 = vlaneseq
    %v146 = vshrl.u32 %v145, 7
    %v147 = vsub.s32 %v144, %v146
    %v148 = vrot.slane %v137, %v147
    %v149 = vlaneseq
    %v150 = vshrl.u32 %v149, 7
    %v151 = vsub.s32 %v144, %v150
    %v152 = vrot.slane %v140, %v151
    %vm153 = vcmask 1041409
    %v154 = vsel %vm153, %v152, %v148
    %vm156 = vcmask 58368
    %v157 = vsel %vm156, %v154, -inf
    %158 = vmax.xlane.f32.xlu0 %v157
    %v159 = vpop.xlane.xlu0 %158
    %v161 = vlaneseq
    %v162 = vshrl.u32 %v161, 7
    %v163 = vsub.s32 0, %v162
    %v164 = vrot.slane %v159, %v163
    %v165 = vlaneseq
    %v166 = vshrl.u32 %v165, 7
    %v167 = vsub.s32 1, %v166
    %v168 = vrot.slane %v159, %v167
    %v171 = vsub.f32 %v137, %v164
    %v172 = vsub.f32 %v140, %v168
    %v173 = vmul.f32 %v171, 1.442695
    %v174 = vpow.pop %v173
    %v175 = vmul.f32 %v172, 1.442695
    %v176 = vpow.pop %v175
    %179 = vset.pattern.permute.xlu0 0
    %180 = vperm.xlu0 %179, %v174
    %v181 = vpop.permute.xlu0 %180
    %182 = vset.pattern.permute.xlu0 0
    %183 = vperm.xlu0 %182, %v176
    %v184 = vpop.permute.xlu0 %183
    %v185 = vlaneseq
    %v186 = vshrl.u32 %v185, 7
    %v187 = vsub.s32 %v144, %v186
    %v188 = vrot.slane %v181, %v187
    %v189 = vlaneseq
    %v190 = vshrl.u32 %v189, 7
    %v191 = vsub.s32 %v144, %v190
    %v192 = vrot.slane %v184, %v191
    %v193 = vsel %vm153, %v192, %v188
    %v195 = vsel %vm156, %v193, 0.0
    %196 = vadd.xlane.f32.xlu0 %v195
    %v197 = vpop.xlane.xlu0 %196
    %v198 = vpack.c.bf16 %v174, %v174
    %v199 = vpack.c.bf16 %v176, %v176
    %v201 = vunpack.c.l.b16 %v198
    %202 = vset.pattern.permute.xlu0 0
    %203 = vperm.xlu0 %202, %v201
    %v204 = vpop.permute.xlu0 %203
    %v205 = vlaneseq
    %v206 = vshrl.u32 %v205, 7
    %v207 = vsub.s32 %v144, %v206
    %v208 = vrot.slane %v204, %v207
    %v209 = vpack.c.b16 %v208, %v208
    %vm210 = vcmask 64512
    %v212 = vsel %vm210, %v209, 0
    %vm214 = vcmask 1043456
    %v216 = vsel %vm214, %v49, 0
    %218 = vmatprep.subr.bf16.mxu0 0
    %219 = vmatpush1.bf16.msra.mxu0 %v216
    %220 = vmatprep.subr.bf16.mxu0 0
    %221 = vmatpush1.bf16.msra.mxu0 0
    %222 = vmatprep.subr.bf16.mxu0 0
    %223 = vmatpush1.bf16.msra.mxu0 0
    %224 = vmatprep.subr.bf16.mxu0 0
    %225 = vmatpush1.bf16.msra.mxu0 0
    %226 = vmatprep.subr.bf16.mxu0 0
    %227 = vmatpush1.bf16.msra.mxu0 0
    %228 = vmatprep.subr.bf16.mxu0 0
    %229 = vmatpush1.bf16.msra.mxu0 0
    %230 = vmatprep.subr.bf16.mxu0 0
    %231 = vmatpush1.bf16.msra.mxu0 0
    %232 = vmatprep.subr.bf16.mxu0 0
    %233 = vmatpush1.bf16.msra.mxu0 0
    %234 = vmatprep.subr.bf16.mxu0 0
    %235 = vmatpush1.bf16.msra.mxu0 0
    %236 = vmatprep.subr.bf16.mxu0 0
    %237 = vmatpush1.bf16.msra.mxu0 0
    %238 = vmatprep.subr.bf16.mxu0 0
    %239 = vmatpush1.bf16.msra.mxu0 0
    %240 = vmatprep.subr.bf16.mxu0 0
    %241 = vmatpush1.bf16.msra.mxu0 0
    %242 = vmatprep.subr.bf16.mxu0 0
    %243 = vmatpush1.bf16.msra.mxu0 0
    %244 = vmatprep.subr.bf16.mxu0 0
    %245 = vmatpush1.bf16.msra.mxu0 0
    %246 = vmatprep.subr.bf16.mxu0 0
    %247 = vmatpush1.bf16.msra.mxu0 0
    %248 = vmatprep.subr.bf16.mxu0 0
    %249 = vmatpush1.bf16.msra.mxu0 0
    %250 = vmatprep.mubr.bf16.mxu0 0
    %251 = vmatmul.mubr.bf16.gmra.mrb[0].mxu0 %v212
    %v252 = vpop.f32.mrb[0].mxu0
    %v253 = vadd.f32 0.0, %v252
    %v254 = vpop.f32.mrb[0].mxu0
    %v255 = vpop.f32.mrb[0].mxu0
    %v256 = vpop.f32.mrb[0].mxu0
    %257 = vdwg.mxu0
    %v259 = vunpack.c.l.b16 %v199
    %260 = vset.pattern.permute.xlu0 0
    %261 = vperm.xlu0 %260, %v259
    %v262 = vpop.permute.xlu0 %261
    %v263 = vlaneseq
    %v264 = vshrl.u32 %v263, 7
    %v265 = vsub.s32 %v144, %v264
    %v266 = vrot.slane %v262, %v265
    %v267 = vpack.c.b16 %v266, %v266
    %v269 = vsel %vm210, %v267, 0
    %v272 = vsel %vm214, %v50, 0
    %274 = vmatprep.subr.bf16.mxu0 0
    %275 = vmatpush1.bf16.msra.mxu0 %v272
    %276 = vmatprep.subr.bf16.mxu0 0
    %277 = vmatpush1.bf16.msra.mxu0 0
    %278 = vmatprep.subr.bf16.mxu0 0
    %279 = vmatpush1.bf16.msra.mxu0 0
    %280 = vmatprep.subr.bf16.mxu0 0
    %281 = vmatpush1.bf16.msra.mxu0 0
    %282 = vmatprep.subr.bf16.mxu0 0
    %283 = vmatpush1.bf16.msra.mxu0 0
    %284 = vmatprep.subr.bf16.mxu0 0
    %285 = vmatpush1.bf16.msra.mxu0 0
    %286 = vmatprep.subr.bf16.mxu0 0
    %287 = vmatpush1.bf16.msra.mxu0 0
    %288 = vmatprep.subr.bf16.mxu0 0
    %289 = vmatpush1.bf16.msra.mxu0 0
    %290 = vmatprep.subr.bf16.mxu0 0
    %291 = vmatpush1.bf16.msra.mxu0 0
    %292 = vmatprep.subr.bf16.mxu0 0
    %293 = vmatpush1.bf16.msra.mxu0 0
    %294 = vmatprep.subr.bf16.mxu0 0
    %295 = vmatpush1.bf16.msra.mxu0 0
    %296 = vmatprep.subr.bf16.mxu0 0
    %297 = vmatpush1.bf16.msra.mxu0 0
    %298 = vmatprep.subr.bf16.mxu0 0
    %299 = vmatpush1.bf16.msra.mxu0 0
    %300 = vmatprep.subr.bf16.mxu0 0
    %301 = vmatpush1.bf16.msra.mxu0 0
    %302 = vmatprep.subr.bf16.mxu0 0
    %303 = vmatpush1.bf16.msra.mxu0 0
    %304 = vmatprep.subr.bf16.mxu0 0
    %305 = vmatpush1.bf16.msra.mxu0 0
    %306 = vmatprep.mubr.bf16.mxu0 0
    %307 = vmatmul.mubr.bf16.gmra.mrb[0].mxu0 %v269
    %v308 = vpop.f32.mrb[0].mxu0
    %v309 = vadd.f32 0.0, %v308
    %v310 = vpop.f32.mrb[0].mxu0
    %v311 = vpop.f32.mrb[0].mxu0
    %v312 = vpop.f32.mrb[0].mxu0
    %313 = vdwg.mxu0
    %v314 = vrcp.pop %v197
    %v316 = vrot.slane %v314, 1
    %v319 = vmul.f32 %v253, %v314
    %v320 = vmul.f32 %v309, %v316
    %v323 = vrot.slane %v320, 7
    %v324 = vsel %vm153, %v323, %v319
    %vm326 = vcmask 254976
    %327 = vst.msk [vmem:[#allocation7] sm:$0x3] %vm326, %v324
    // Predicated region
    $region26: #{tpu_custom_call.1} parent=1 // pred_check
      _
    $region27: #{tpu_custom_call.1} parent=1 // pred_check_branch
      %329 = sbr.rel (0) target = $region29
    $region28: #{tpu_custom_call.1} parent=1 // pred_region
      %s331 = ssub.s32 32, 32
      %332 = vsyncadd [#allocation4], %s331
      %s334 = sshll.u32 [#allocation7], 4
      %s335 = int_to_ptr.vmem [resolvable:$true] %s334
      %337 = dma.vmem_to_hbm [thread:$0]  %s335, 32, %s4, [#allocation4]
    $region29: #{tpu_custom_call.1} parent=1 // pred_fallthru
      _
    // Predicated region
    $region30: #{tpu_custom_call.1} parent=1 // pred_check
      _
    $region31: #{tpu_custom_call.1} parent=1 // pred_check_branch
      %339 = sbr.rel (0) target = $region33
    $region32: #{tpu_custom_call.1} parent=1 // pred_region
      %340 = dma.done [#allocation4], 32
    $region33: #{tpu_custom_call.1} parent=1 // pred_fallthru
      _
    %341 = vsyncpa [#allocation3], 1
    %342 = vsyncpa [#allocation6], 1
    %343 = vsyncpa [#allocation4], 1

</llo_original>
